<compile_context>
chip_gen: v6e
topology: v6e:2x2x1
jax: 0.10.0
libtpu: 0.0.40
codegen_flags: <defaults>
</compile_context>

<pallas_src>
import functools

import jax
import jax.numpy as jnp
from jax.experimental import pallas as pl
from jax.experimental.pallas import tpu as pltpu


# --------------------------------- helpers -----------------------------------

def _round_up(v, m):
    return (v + m - 1) // m * m


def _vmem_capacity_bytes():
    try:
        info = pltpu.get_tpu_info()
        cap = getattr(info, "vmem_capacity_bytes", None)
        if cap:
            return int(cap)
    except Exception:
        pass
    return 64 * 1024 * 1024            # v7x-safe fallback (64 MiB per TensorCore)


def _choose_c_tile(c_pad8, np_lanes, itemsize, vmem_cap, c_block):
    """Pick the C (contraction) tile from the VMEM budget; pad C up to a multiple."""
    if c_block is not None:                       # explicit override (testing)
        tc = max(128, _round_up(c_block, 128))
        if tc >= c_pad8:
            return c_pad8, 1
        return tc, -(-c_pad8 // tc)
    x_budget = vmem_cap // 5                      # double-buffered x-stream budget
    if 2 * c_pad8 * np_lanes * itemsize <= x_budget:
        return c_pad8, 1                          # whole contraction in one step
    tc = max(128, (x_budget // (2 * np_lanes * itemsize)) // 128 * 128)
    return tc, -(-c_pad8 // tc)


# ------------------------------- Pallas kernel --------------------------------

def _make_xcorr_kernel(kz, wz, wx, np_out, nk):
    """kz = Hz*Wz real template positions; lane offsets are static: i*Wx + j."""
    offs = [(k // wz) * wx + (k % wz) for k in range(kz)]

    def _combine(p):
        # p: [Kz_pad, Np] f32.   out_row[q] = sum_k p[k, q + offs[k]]
        acc = p[0:1, offs[0]:offs[0] + np_out]
        for k in range(1, kz):
            acc = acc + p[k:k + 1, offs[k]:offs[k] + np_out]
        return acc                                 # [1, np_out] f32

    if nk == 1:
        # Single contraction step: no scratch accumulator, no init/finalize.
        def kernel(z_ref, x_ref, o_ref):
            p = jnp.dot(z_ref[0], x_ref[0], preferred_element_type=jnp.float32)
            o_ref[0] = _combine(p).astype(o_ref.dtype)
        return kernel, False

    def kernel(z_ref, x_ref, o_ref, p_acc):
        ki = pl.program_id(1)

        @pl.when(ki == 0)
        def _init():
            p_acc[...] = jnp.zeros_like(p_acc)

        p_acc[...] += jnp.dot(z_ref[0], x_ref[0],
                              preferred_element_type=jnp.float32)

        @pl.when(ki == nk - 1)
        def _finalize():
            o_ref[0] = _combine(p_acc[...]).astype(o_ref.dtype)

    return kernel, True


# ---------------------------------- wrapper -----------------------------------

def xcorr(z, x, *, compute_dtype=jnp.bfloat16, c_block=None):
    """SiamFC cross-correlation.  z: [B,C,Hz,Wz], x: [B,C,Hx,Wx] -> [B,1,Ho,Wo] f32."""
    b, c, hz, wz = z.shape
    bx, cx, hx, wx = x.shape
    assert (b, c) == (bx, cx) and hx >= hz and wx >= wz

    ho, wo = hx - hz + 1, wx - wz + 1
    kz = hz * wz
    kz_pad = _round_up(kz, 8)
    l_out = (ho - 1) * wx + wo                     # valid prefix of the Wx-strided out row
    np_out = _round_up(l_out, 128)                 # lane-dense kernel output width
    off_max = (hz - 1) * wx + (wz - 1)
    np_lanes = _round_up(max(hx * wx, off_max + np_out), 128)

    # Cast FIRST (halves all downstream operand bytes), then pure-layout reshapes.
    zc = z.astype(compute_dtype)
    xc = x.astype(compute_dtype)
    z_mat = jnp.transpose(zc.reshape(b, c, kz), (0, 2, 1))     # [B, Hz*Wz, C]
    x_mat = xc.reshape(b, c, hx * wx)                          # [B, C, Hx*Wx]

    itemsize = jnp.dtype(compute_dtype).itemsize
    vmem_cap = _vmem_capacity_bytes()
    c_pad8 = _round_up(c, 8)
    tc, nk = _choose_c_tile(c_pad8, np_lanes, itemsize, vmem_cap, c_block)
    c_final = tc * nk

    z_mat = jnp.pad(z_mat, ((0, 0), (0, kz_pad - kz), (0, c_final - c)))
    x_mat = jnp.pad(x_mat, ((0, 0), (0, c_final - c), (0, np_lanes - hx * wx)))

    kernel, needs_acc = _make_xcorr_kernel(kz, wz, wx, np_out, nk)
    scratch = [pltpu.VMEM((kz_pad, np_lanes), jnp.float32)] if needs_acc else []

    out_rows = pl.pallas_call(
        kernel,
        out_shape=jax.ShapeDtypeStruct((b, 1, np_out), jnp.float32),
        grid=(b, nk),
        in_specs=[
            pl.BlockSpec((1, kz_pad, tc), lambda bi, ki: (bi, 0, ki)),
            pl.BlockSpec((1, tc, np_lanes), lambda bi, ki: (bi, ki, 0)),
        ],
        out_specs=pl.BlockSpec((1, 1, np_out), lambda bi, ki: (bi, 0, 0)),
        scratch_shapes=scratch,
        compiler_params=pltpu.CompilerParams(
            dimension_semantics=("parallel", "arbitrary"),
            vmem_limit_bytes=int(min(vmem_cap * 3 // 4, 96 * 1024 * 1024)),
        ),
    )(z_mat, x_mat)

    # out_row[b, q] with q = oh*Wx + ow  ->  [B, 1, Ho, Wo]  (pure XLA glue, tiny).
    flat = out_rows[:, 0, :l_out]
    flat = jnp.pad(flat, ((0, 0), (0, ho * wx - l_out)))
    out = flat.reshape(b, ho, wx)[:, :, :wo]
    return out[:, None, :, :]


# ----------------------------- pure-JAX reference ------------------------------

def _xcorr_reference(z, x):
    def one(zi, xi):
        return jax.lax.conv_general_dilated(
            xi[None].astype(jnp.float32), zi[None].astype(jnp.float32),
            window_strides=(1, 1), padding="VALID",
            dimension_numbers=("NCHW", "OIHW", "NCHW"))[0]
    return jax.vmap(one)(z, x)


if __name__ == "__main__":
    root = jax.random.PRNGKey(0)

    def run_case(seed, shape_z, shape_x, **kw):
        kz_, kx_ = jax.random.split(jax.random.fold_in(root, seed))
        z = jax.random.normal(kz_, shape_z, jnp.float32)
        x = jax.random.normal(kx_, shape_x, jnp.float32)
        out = jax.block_until_ready(jax.jit(functools.partial(xcorr, **kw))(z, x))
        ref = jax.block_until_ready(_xcorr_reference(z, x))
        assert out.shape == ref.shape, (out.shape, ref.shape)
        assert out.dtype == jnp.float32
        scale = float(jnp.max(jnp.abs(ref)))
        err = float(jnp.max(jnp.abs(out - ref)))
        assert err <= 2e-2 * scale + 1e-3, (seed, err, scale)

    # SiamFC-like: 6x6 template vs 22x22 search features (bf16 operands, fast path).
    run_case(0, (2, 32, 6, 6), (2, 32, 22, 22))
    # Forced C-tiling (2 contraction steps, f32 operands) exercises the accumulator path.
    run_case(1, (2, 256, 3, 3), (2, 256, 16, 20),
             compute_dtype=jnp.float32, c_block=128)
    # Ragged dims: C not a multiple of 8, non-square template / search.
    run_case(2, (2, 5, 2, 4), (2, 5, 9, 11))

    print("KERNEL_OK")
</pallas_src>

<mosaic_0001>
module attributes {stable_mosaic.version = 11 : i64} {
  func.func @kernel(%arg0: i32, %arg1: i32, %arg2: memref<1x40x32xbf16, #tpu.memory_space<vmem>>, %arg3: memref<1x32x512xbf16, #tpu.memory_space<vmem>>, %arg4: memref<1x1x384xf32, #tpu.memory_space<vmem>>) attributes {dimension_semantics = [#tpu.dimension_semantics<parallel>, #tpu.dimension_semantics<arbitrary>], iteration_bounds = array<i64: 2, 1>, scalar_prefetch = 0 : i64, scratch_operands = 0 : i64, tpu.core_type = #tpu.core_type<tc>, window_params = [{transform_indices = @transform_0, window_bounds = array<i64: 1, 40, 32>}, {transform_indices = @transform_1, window_bounds = array<i64: 1, 32, 512>}, {transform_indices = @transform_2, window_bounds = array<i64: 1, 1, 384>}]} {
    %c0 = arith.constant 0 : index
    %c0_0 = arith.constant 0 : index
    %c0_1 = arith.constant 0 : index
    %0 = vector.load %arg2[%c0, %c0_0, %c0_1] : memref<1x40x32xbf16, #tpu.memory_space<vmem>>, vector<1x40x32xbf16>
    %1 = vector.shape_cast %0 : vector<1x40x32xbf16> to vector<40x32xbf16>
    %c0_2 = arith.constant 0 : index
    %c0_3 = arith.constant 0 : index
    %c0_4 = arith.constant 0 : index
    %2 = vector.load %arg3[%c0_2, %c0_3, %c0_4] : memref<1x32x512xbf16, #tpu.memory_space<vmem>>, vector<1x32x512xbf16>
    %3 = vector.shape_cast %2 : vector<1x32x512xbf16> to vector<32x512xbf16>
    %cst = arith.constant dense<0.000000e+00> : vector<40x512xf32>
    %4 = tpu.matmul %1, %3, %cst {dimension_numbers = #tpu.dot_dimension_numbers<[1], [0], [0], [1], [0, 0, 1, 1], [], []>} : vector<40x32xbf16>, vector<32x512xbf16>, vector<40x512xf32> -> vector<40x512xf32>
    %5 = vector.extract_strided_slice %4 {offsets = [0, 0], sizes = [1, 384], strides = [1, 1]} : vector<40x512xf32> to vector<1x384xf32>
    %6 = vector.extract_strided_slice %4 {offsets = [1, 1], sizes = [1, 384], strides = [1, 1]} : vector<40x512xf32> to vector<1x384xf32>
    %7 = arith.addf %5, %6 : vector<1x384xf32>
    %8 = vector.extract_strided_slice %4 {offsets = [2, 2], sizes = [1, 384], strides = [1, 1]} : vector<40x512xf32> to vector<1x384xf32>
    %9 = arith.addf %7, %8 : vector<1x384xf32>
    %10 = vector.extract_strided_slice %4 {offsets = [3, 3], sizes = [1, 384], strides = [1, 1]} : vector<40x512xf32> to vector<1x384xf32>
    %11 = arith.addf %9, %10 : vector<1x384xf32>
    %12 = vector.extract_strided_slice %4 {offsets = [4, 4], sizes = [1, 384], strides = [1, 1]} : vector<40x512xf32> to vector<1x384xf32>
    %13 = arith.addf %11, %12 : vector<1x384xf32>
    %14 = vector.extract_strided_slice %4 {offsets = [5, 5], sizes = [1, 384], strides = [1, 1]} : vector<40x512xf32> to vector<1x384xf32>
    %15 = arith.addf %13, %14 : vector<1x384xf32>
    %16 = vector.extract_strided_slice %4 {offsets = [6, 22], sizes = [1, 384], strides = [1, 1]} : vector<40x512xf32> to vector<1x384xf32>
    %17 = arith.addf %15, %16 : vector<1x384xf32>
    %18 = vector.extract_strided_slice %4 {offsets = [7, 23], sizes = [1, 384], strides = [1, 1]} : vector<40x512xf32> to vector<1x384xf32>
    %19 = arith.addf %17, %18 : vector<1x384xf32>
    %20 = vector.extract_strided_slice %4 {offsets = [8, 24], sizes = [1, 384], strides = [1, 1]} : vector<40x512xf32> to vector<1x384xf32>
    %21 = arith.addf %19, %20 : vector<1x384xf32>
    %22 = vector.extract_strided_slice %4 {offsets = [9, 25], sizes = [1, 384], strides = [1, 1]} : vector<40x512xf32> to vector<1x384xf32>
    %23 = arith.addf %21, %22 : vector<1x384xf32>
    %24 = vector.extract_strided_slice %4 {offsets = [10, 26], sizes = [1, 384], strides = [1, 1]} : vector<40x512xf32> to vector<1x384xf32>
    %25 = arith.addf %23, %24 : vector<1x384xf32>
    %26 = vector.extract_strided_slice %4 {offsets = [11, 27], sizes = [1, 384], strides = [1, 1]} : vector<40x512xf32> to vector<1x384xf32>
    %27 = arith.addf %25, %26 : vector<1x384xf32>
    %28 = vector.extract_strided_slice %4 {offsets = [12, 44], sizes = [1, 384], strides = [1, 1]} : vector<40x512xf32> to vector<1x384xf32>
    %29 = arith.addf %27, %28 : vector<1x384xf32>
    %30 = vector.extract_strided_slice %4 {offsets = [13, 45], sizes = [1, 384], strides = [1, 1]} : vector<40x512xf32> to vector<1x384xf32>
    %31 = arith.addf %29, %30 : vector<1x384xf32>
    %32 = vector.extract_strided_slice %4 {offsets = [14, 46], sizes = [1, 384], strides = [1, 1]} : vector<40x512xf32> to vector<1x384xf32>
    %33 = arith.addf %31, %32 : vector<1x384xf32>
    %34 = vector.extract_strided_slice %4 {offsets = [15, 47], sizes = [1, 384], strides = [1, 1]} : vector<40x512xf32> to vector<1x384xf32>
    %35 = arith.addf %33, %34 : vector<1x384xf32>
    %36 = vector.extract_strided_slice %4 {offsets = [16, 48], sizes = [1, 384], strides = [1, 1]} : vector<40x512xf32> to vector<1x384xf32>
    %37 = arith.addf %35, %36 : vector<1x384xf32>
    %38 = vector.extract_strided_slice %4 {offsets = [17, 49], sizes = [1, 384], strides = [1, 1]} : vector<40x512xf32> to vector<1x384xf32>
    %39 = arith.addf %37, %38 : vector<1x384xf32>
    %40 = vector.extract_strided_slice %4 {offsets = [18, 66], sizes = [1, 384], strides = [1, 1]} : vector<40x512xf32> to vector<1x384xf32>
    %41 = arith.addf %39, %40 : vector<1x384xf32>
    %42 = vector.extract_strided_slice %4 {offsets = [19, 67], sizes = [1, 384], strides = [1, 1]} : vector<40x512xf32> to vector<1x384xf32>
    %43 = arith.addf %41, %42 : vector<1x384xf32>
    %44 = vector.extract_strided_slice %4 {offsets = [20, 68], sizes = [1, 384], strides = [1, 1]} : vector<40x512xf32> to vector<1x384xf32>
    %45 = arith.addf %43, %44 : vector<1x384xf32>
    %46 = vector.extract_strided_slice %4 {offsets = [21, 69], sizes = [1, 384], strides = [1, 1]} : vector<40x512xf32> to vector<1x384xf32>
    %47 = arith.addf %45, %46 : vector<1x384xf32>
    %48 = vector.extract_strided_slice %4 {offsets = [22, 70], sizes = [1, 384], strides = [1, 1]} : vector<40x512xf32> to vector<1x384xf32>
    %49 = arith.addf %47, %48 : vector<1x384xf32>
    %50 = vector.extract_strided_slice %4 {offsets = [23, 71], sizes = [1, 384], strides = [1, 1]} : vector<40x512xf32> to vector<1x384xf32>
    %51 = arith.addf %49, %50 : vector<1x384xf32>
    %52 = vector.extract_strided_slice %4 {offsets = [24, 88], sizes = [1, 384], strides = [1, 1]} : vector<40x512xf32> to vector<1x384xf32>
    %53 = arith.addf %51, %52 : vector<1x384xf32>
    %54 = vector.extract_strided_slice %4 {offsets = [25, 89], sizes = [1, 384], strides = [1, 1]} : vector<40x512xf32> to vector<1x384xf32>
    %55 = arith.addf %53, %54 : vector<1x384xf32>
    %56 = vector.extract_strided_slice %4 {offsets = [26, 90], sizes = [1, 384], strides = [1, 1]} : vector<40x512xf32> to vector<1x384xf32>
    %57 = arith.addf %55, %56 : vector<1x384xf32>
    %58 = vector.extract_strided_slice %4 {offsets = [27, 91], sizes = [1, 384], strides = [1, 1]} : vector<40x512xf32> to vector<1x384xf32>
    %59 = arith.addf %57, %58 : vector<1x384xf32>
    %60 = vector.extract_strided_slice %4 {offsets = [28, 92], sizes = [1, 384], strides = [1, 1]} : vector<40x512xf32> to vector<1x384xf32>
    %61 = arith.addf %59, %60 : vector<1x384xf32>
    %62 = vector.extract_strided_slice %4 {offsets = [29, 93], sizes = [1, 384], strides = [1, 1]} : vector<40x512xf32> to vector<1x384xf32>
    %63 = arith.addf %61, %62 : vector<1x384xf32>
    %64 = vector.extract_strided_slice %4 {offsets = [30, 110], sizes = [1, 384], strides = [1, 1]} : vector<40x512xf32> to vector<1x384xf32>
    %65 = arith.addf %63, %64 : vector<1x384xf32>
    %66 = vector.extract_strided_slice %4 {offsets = [31, 111], sizes = [1, 384], strides = [1, 1]} : vector<40x512xf32> to vector<1x384xf32>
    %67 = arith.addf %65, %66 : vector<1x384xf32>
    %68 = vector.extract_strided_slice %4 {offsets = [32, 112], sizes = [1, 384], strides = [1, 1]} : vector<40x512xf32> to vector<1x384xf32>
    %69 = arith.addf %67, %68 : vector<1x384xf32>
    %70 = vector.extract_strided_slice %4 {offsets = [33, 113], sizes = [1, 384], strides = [1, 1]} : vector<40x512xf32> to vector<1x384xf32>
    %71 = arith.addf %69, %70 : vector<1x384xf32>
    %72 = vector.extract_strided_slice %4 {offsets = [34, 114], sizes = [1, 384], strides = [1, 1]} : vector<40x512xf32> to vector<1x384xf32>
    %73 = arith.addf %71, %72 : vector<1x384xf32>
    %74 = vector.extract_strided_slice %4 {offsets = [35, 115], sizes = [1, 384], strides = [1, 1]} : vector<40x512xf32> to vector<1x384xf32>
    %75 = arith.addf %73, %74 : vector<1x384xf32>
    %c0_5 = arith.constant 0 : index
    %c0_6 = arith.constant 0 : index
    %c0_7 = arith.constant 0 : index
    %76 = vector.load %arg4[%c0_5, %c0_6, %c0_7] : memref<1x1x384xf32, #tpu.memory_space<vmem>>, vector<1x1x384xf32>
    %77 = vector.shape_cast %76 : vector<1x1x384xf32> to vector<1x384xf32>
    %78 = vector.shape_cast %75 : vector<1x384xf32> to vector<1x1x384xf32>
    tpu.vector_store %arg4[%c0_5, %c0_6, %c0_7], %78 {strides = array<i32>} : memref<1x1x384xf32, #tpu.memory_space<vmem>>, vector<1x1x384xf32>,
    return
  }
  func.func @transform_0(%arg0: i32, %arg1: i32) -> (i32, i32, i32) {
    %c0_i32 = arith.constant 0 : i32
    %c0_i32_0 = arith.constant 0 : i32
    return %arg0, %c0_i32, %arg1 : i32, i32, i32
  }
  func.func @transform_1(%arg0: i32, %arg1: i32) -> (i32, i32, i32) {
    %c0_i32 = arith.constant 0 : i32
    %c0_i32_0 = arith.constant 0 : i32
    return %arg0, %arg1, %c0_i32 : i32, i32, i32
  }
  func.func @transform_2(%arg0: i32, %arg1: i32) -> (i32, i32, i32) {
    %c0_i32 = arith.constant 0 : i32
    %c0_i32_0 = arith.constant 0 : i32
    %c0_i32_1 = arith.constant 0 : i32
    return %arg0, %c0_i32, %c0_i32_0 : i32, i32, i32
  }
}

</mosaic_0001>

<llo_original>
// kernel: xcorr.1
$region0: #{xcorr.1}
  #allocation0 [shape = 'u32[]', space=smem, size = 0x4, offset = 0x4, fixed_abs, tag = 'smem constant byte address 0x4 - core index']
  #allocation1 [shape = 'u32[144,128]{1,0:T(1,128)}', space=vmem, size = 0x12000, scoped, tag = 'internal scratch']
  %s0 = inlined_call_operand.vmem [shape: bf16[2,40,32], index: 0, kind: input, shape index: {}]
  %s1 = inlined_call_operand.vmem [shape: bf16[2,32,512], index: 1, kind: input, shape index: {}]
  %s2 = inlined_call_operand.vmem [shape: f32[2,1,384], index: 2, kind: output, shape index: {}]
  %s3 = sld [smem:[#allocation0]]
  $region41: #{xcorr.1} parent=0
    _
  %s5 = ssub.s32 1, %s3
  %s6 = scalar_select 0, %s5, %s3
  loop: start=0, step=1, limit=4
  $region2: #{xcorr.1} parent=0 // loop_pre_header
    _
  $region3: #{xcorr.1} parent=0 // loop_header
    %s8 = sphi 0, %s12
    %p9 = scmp.ge.s32.totalorder %s8, 4
    %s15 = sphi 0, %s27
    %s16 = sphi 0, %s23
    %s17 = sphi 0, %s15
    %s18 = sphi 0, %s16
    %s19 = sphi 0, %s17
    %s20 = sphi 0, %s18
    %s32 = sphi 0, %s34
    %s35 = sphi 0, %s32
    %s36 = sphi 0, %s35
    %s52 = sphi 0, %s36
    %s60 = sphi 0, %s62
    %s63 = sphi 0, %s60
    %s64 = sphi 0, %s63
    %s80 = sphi 0, %s64
    %s86 = sphi 0, %s88
    %s89 = sphi 0, %s86
    %s90 = sphi 0, %s89
    %s106 = sphi 0, %s90
  $region4: #{xcorr.1} parent=0 // loop_header_branch
    %11 = sbr.rel (%p9) target = $region8
  $region5: #{xcorr.1} parent=0 // loop_body
    %s13 = ssub.s32 %s8, 1
    %s14 = ssub.s32 %s8, 2
    %s21 = sadd.s32 1, %s16
    %p22 = scmp.ge.s32.totalorder %s21, 1
    %s23 = scalar_select %p22, 0, %s21
    %s24 = sadd.s32 1, %s15
    %s25 = scalar_select %p22, %s24, %s15
    %p26 = scmp.ge.s32.totalorder %s25, 2
    %s27 = scalar_select %p26, 0, %s25
    %s28 = ssub.s32 %s15, %s27
    %s29 = ssub.s32 %s16, %s23
    %s30 = sor.u32 %s28, %s29
    %p31 = scmp.eq.s32.totalorder %s30, 0
    %s33 = sadd.s32 %s32, 1
    %s34 = scalar_select %p31, %s32, %s33
    %p37 = pneg %p31
    %p38 = scmp.eq.s32.totalorder %s8, 1
    %p39 = por %p37, %p38
    %p40 = scmp.ne.s32.totalorder %s32, %s35
    %p41 = scmp.eq.s32.totalorder %s8, 0
    %p42 = por %p40, %p41
    %p43 = scmp.ne.s32.totalorder %s32, %s35
    %p44 = scmp.eq.s32.totalorder %s13, 1
    %p45 = por %p43, %p44
    %p46 = scmp.ne.s32.totalorder %s35, %s36
    %p47 = scmp.eq.s32.totalorder %s13, 0
    %p48 = por %p46, %p47
    %p49 = scmp.ne.s32.totalorder %s35, %s36
    %p50 = scmp.eq.s32.totalorder %s14, 1
    %p51 = por %p49, %p50
    %p53 = scmp.ne.s32.totalorder %s36, %s52
    %p54 = scmp.eq.s32.totalorder %s14, 0
    %p55 = por %p53, %p54
    %s56 = ssub.s32 %s15, %s27
    %s57 = ssub.s32 %s16, %s23
    %s58 = sor.u32 %s56, %s57
    %p59 = scmp.eq.s32.totalorder %s58, 0
    %s61 = sadd.s32 %s60, 1
    %s62 = scalar_select %p59, %s60, %s61
    %p65 = pneg %p59
    %p66 = scmp.eq.s32.totalorder %s8, 1
    %p67 = por %p65, %p66
    %p68 = scmp.ne.s32.totalorder %s60, %s63
    %p69 = scmp.eq.s32.totalorder %s8, 0
    %p70 = por %p68, %p69
    %p71 = scmp.ne.s32.totalorder %s60, %s63
    %p72 = scmp.eq.s32.totalorder %s13, 1
    %p73 = por %p71, %p72
    %p74 = scmp.ne.s32.totalorder %s63, %s64
    %p75 = scmp.eq.s32.totalorder %s13, 0
    %p76 = por %p74, %p75
    %p77 = scmp.ne.s32.totalorder %s63, %s64
    %p78 = scmp.eq.s32.totalorder %s14, 1
    %p79 = por %p77, %p78
    %p81 = scmp.ne.s32.totalorder %s64, %s80
    %p82 = scmp.eq.s32.totalorder %s14, 0
    %p83 = por %p81, %p82
    %s84 = ssub.s32 %s15, %s27
    %p85 = scmp.eq.s32.totalorder %s84, 0
    %s87 = sadd.s32 %s86, 1
    %s88 = scalar_select %p85, %s86, %s87
    %p91 = pneg %p85
    %p92 = scmp.eq.s32.totalorder %s8, 1
    %p93 = por %p91, %p92
    %p94 = scmp.ne.s32.totalorder %s86, %s89
    %p95 = scmp.eq.s32.totalorder %s8, 0
    %p96 = por %p94, %p95
    %p97 = scmp.ne.s32.totalorder %s86, %s89
    %p98 = scmp.eq.s32.totalorder %s13, 1
    %p99 = por %p97, %p98
    %p100 = scmp.ne.s32.totalorder %s89, %s90
    %p101 = scmp.eq.s32.totalorder %s13, 0
    %p102 = por %p100, %p101
    %p103 = scmp.ne.s32.totalorder %s89, %s90
    %p104 = scmp.eq.s32.totalorder %s14, 1
    %p105 = por %p103, %p104
    %p107 = scmp.ne.s32.totalorder %s90, %s106
    %p108 = scmp.eq.s32.totalorder %s14, 0
    %p109 = por %p107, %p108
    %p110 = scmp.le.s32.totalorder 1, %s8
    %p111 = scmp.lt.s32.totalorder %s8, 3
    %p112 = pnand %p110, %p111
    %p113 = pneg %p112
    // Predicated region
    $region9: #{xcorr.1} parent=5 // pred_check
      _
    $region10: #{xcorr.1} parent=5 // pred_check_branch
      %115 = sbr.rel (%p112) target = $region12
    $region11: #{xcorr.1} parent=5 // pred_region
      %s116 = ssub.s32 %s8, 1
    $region12: #{xcorr.1} parent=5 // pred_fallthru
      _
    %p117 = scmp.lt.s32.totalorder %s8, 2
    // Predicated region
    $region13: #{xcorr.1} parent=5 // pred_check
      %p118 = pneg %p117
    $region14: #{xcorr.1} parent=5 // pred_check_branch
      %120 = sbr.rel (%p118) target = $region16
    $region15: #{xcorr.1} parent=5 // pred_region
      // Predicated region
      $region17: #{xcorr.1} parent=15 // pred_check
        %p121 = pneg %p42
      $region18: #{xcorr.1} parent=15 // pred_check_branch
        %123 = sbr.rel (%p121) target = $region20
      $region19: #{xcorr.1} parent=15 // pred_region
        %p124 = scmp.lt.s32.totalorder %s15, 1
        %s125 = scalar_select %p124, %s15, 1
        %p126 = scmp.lt.s32.totalorder %s16, 0
        %s127 = scalar_select %p126, %s16, 0
        %s128 = smul.addr %s125, 5
        %s129 = sadd.s32 %s127, %s128
        %s130 = smul.addr %s129, 4
        %s131 = scalar_lea.vmem %s0, %s130
      $region20: #{xcorr.1} parent=15 // pred_fallthru
        _
      // Predicated region
      $region21: #{xcorr.1} parent=15 // pred_check
        %p132 = pneg %p70
      $region22: #{xcorr.1} parent=15 // pred_check_branch
        %134 = sbr.rel (%p132) target = $region24
      $region23: #{xcorr.1} parent=15 // pred_region
        %s135 = smul.u32 4, %s16
        %p136 = scmp.lt.s32.totalorder %s15, 1
        %s137 = scalar_select %p136, %s15, 1
        %p138 = scmp.lt.s32.totalorder %s135, 3
        %s139 = scalar_select %p138, %s135, 3
        %s140 = smul.addr %s139, 4
        %s141 = smul.addr %s137, 16
        %s142 = sadd.s32 %s140, %s141
        %s143 = smul.addr %s142, 4
        %s144 = scalar_lea.vmem %s1, %s143
        %s145 = smul.u32 4, %s16
      $region24: #{xcorr.1} parent=15 // pred_fallthru
        _
    $region16: #{xcorr.1} parent=5 // pred_fallthru
      _
    %p146 = scmp.le.s32.totalorder 1, %s8
    %p147 = scmp.lt.s32.totalorder %s8, 3
    %p148 = pnand %p146, %p147
    %p149 = pneg %p148
    // Predicated region
    $region25: #{xcorr.1} parent=5 // pred_check
      _
    $region26: #{xcorr.1} parent=5 // pred_check_branch
      %151 = sbr.rel (%p148) target = $region28
    $region27: #{xcorr.1} parent=5 // pred_region
      %s152 = ssub.s32 %s8, 1
      %p153 = scmp.lt.s32.totalorder %s17, 1
      %s154 = scalar_select %p153, %s17, 1
      %p155 = scmp.lt.s32.totalorder %s18, 0
      %s156 = scalar_select %p155, %s18, 0
      %s157 = smul.addr %s154, 5
      %s158 = sadd.s32 %s156, %s157
      %s159 = smul.addr %s158, 4
      %s160 = scalar_lea.vmem %s0, %s159
      %p161 = pneg %p48
      %p162 = pneg %p45
      %s163 = smul.u32 4, %s18
      %p164 = scmp.lt.s32.totalorder %s17, 1
      %s165 = scalar_select %p164, %s17, 1
      %p166 = scmp.lt.s32.totalorder %s163, 3
      %s167 = scalar_select %p166, %s163, 3
      %s168 = smul.addr %s167, 4
      %s169 = smul.addr %s165, 16
      %s170 = sadd.s32 %s168, %s169
      %s171 = smul.addr %s170, 4
      %s172 = scalar_lea.vmem %s1, %s171
      %p173 = pneg %p76
      %p174 = pneg %p73
      %p175 = pneg %p102
      %p176 = pneg %p99
      %p177 = scmp.lt.s32.totalorder %s17, 1
      %s178 = scalar_select %p177, %s17, 1
      %s179 = smul.addr %s178, 3
      %s180 = scalar_lea.vmem %s2, %s179
      %p181 = scmp.lt.s32.totalorder %s17, 1
      %s182 = scalar_select %p181, %s17, 1
      %p183 = scmp.lt.s32.totalorder %s18, 0
      %s184 = scalar_select %p183, %s18, 0
      %s185 = smul.addr %s182, 5
      %s186 = sadd.s32 %s184, %s185
      %s187 = smul.addr %s186, 4
      %s188 = scalar_lea.vmem %s0, %s187
      %s189 = smul.u32 4, %s18
      %p190 = scmp.lt.s32.totalorder %s17, 1
      %s191 = scalar_select %p190, %s17, 1
      %p192 = scmp.lt.s32.totalorder %s189, 3
      %s193 = scalar_select %p192, %s189, 3
      %s194 = smul.addr %s193, 4
      %s195 = smul.addr %s191, 16
      %s196 = sadd.s32 %s194, %s195
      %s197 = smul.addr %s196, 4
      %s198 = scalar_lea.vmem %s1, %s197
      %s199 = smul.u32 4, %s18
      %p200 = scmp.lt.s32.totalorder %s17, 1
      %s201 = scalar_select %p200, %s17, 1
      %s202 = smul.addr %s201, 3
      %s203 = scalar_lea.vmem %s2, %s202
      %v205 = vld [vmem:[%s188] sm:$0xf]
      %v206 = vld [vmem:[%s188 + $0x4] sm:$0xf]
      %v207 = vld [vmem:[%s188 + $0x8] sm:$0xf]
      %v208 = vld [vmem:[%s188 + $0xc] sm:$0xf]
      %v209 = vld [vmem:[%s188 + $0x10] sm:$0xf]
      %v210 = vld [vmem:[%s198] sm:$0xff]
      %v211 = vld [vmem:[%s198 + $0x8] sm:$0xff]
      %v212 = vld [vmem:[%s198 + $0x10] sm:$0xff]
      %v213 = vld [vmem:[%s198 + $0x18] sm:$0xff]
      %v214 = vld [vmem:[%s198 + $0x20] sm:$0xff]
      %v215 = vld [vmem:[%s198 + $0x28] sm:$0xff]
      %v216 = vld [vmem:[%s198 + $0x30] sm:$0xff]
      %v217 = vld [vmem:[%s198 + $0x38] sm:$0xff]
      %v223 = vunpack.c.l.b16 %v205
      %v224 = vunpack.c.l.b16 %v206
      %v225 = vunpack.c.l.b16 %v207
      %v226 = vunpack.c.l.b16 %v208
      %v227 = vunpack.c.l.b16 %v209
      %v228 = vpack.c.b16 %v224, %v223
      %v229 = vpack.c.b16 %v226, %v225
      %v230 = vpack.c.b16 %v227, %v227
      %v239 = vunpack.c.l.b16 %v210
      %v240 = vunpack.c.h.b16 %v210
      %v241 = vunpack.c.l.b16 %v211
      %v242 = vunpack.c.h.b16 %v211
      %v243 = vunpack.c.l.b16 %v212
      %v244 = vunpack.c.h.b16 %v212
      %v245 = vunpack.c.l.b16 %v213
      %v246 = vunpack.c.h.b16 %v213
      %v247 = vunpack.c.l.b16 %v214
      %v248 = vunpack.c.h.b16 %v214
      %v249 = vunpack.c.l.b16 %v215
      %v250 = vunpack.c.h.b16 %v215
      %v251 = vunpack.c.l.b16 %v216
      %v252 = vunpack.c.h.b16 %v216
      %v253 = vunpack.c.l.b16 %v217
      %v254 = vunpack.c.h.b16 %v217
      %v255 = vpack.c.b16 %v243, %v239
      %v256 = vpack.c.b16 %v244, %v240
      %v257 = vpack.c.b16 %v245, %v241
      %v258 = vpack.c.b16 %v246, %v242
      %v259 = vpack.c.b16 %v251, %v247
      %v260 = vpack.c.b16 %v252, %v248
      %v261 = vpack.c.b16 %v253, %v249
      %v262 = vpack.c.b16 %v254, %v250
      %vm271 = vcmask 261120
      %v273 = vsel %vm271, %v228, 0
      %v276 = vsel %vm271, %v229, 0
      %v279 = vsel %vm271, %v230, 0
      %281 = vmatprep.subr.bf16.mxu0 0
      %282 = vmatpush1.bf16.msra.mxu0 0
      %283 = vmatprep.subr.bf16.mxu0 0
      %284 = vmatpush1.bf16.msra.mxu0 0
      %285 = vmatprep.subr.bf16.mxu0 0
      %286 = vmatpush1.bf16.msra.mxu0 0
      %287 = vmatprep.subr.bf16.mxu0 0
      %288 = vmatpush1.bf16.msra.mxu0 0
      %289 = vmatprep.subr.bf16.mxu0 0
      %290 = vmatpush1.bf16.msra.mxu0 0
      %291 = vmatprep.subr.bf16.mxu0 0
      %292 = vmatpush1.bf16.msra.mxu0 0
      %293 = vmatprep.subr.bf16.mxu0 %v260
      %294 = vmatpush1.bf16.msra.mxu0 %v259
      %295 = vmatprep.subr.bf16.mxu0 %v256
      %296 = vmatpush1.bf16.msra.mxu0 %v255
      %297 = vmatprep.subr.bf16.mxu0 0
      %298 = vmatpush2.bf16.msra.mxu0 0
      %299 = vmatprep.subr.bf16.mxu0 0
      %300 = vmatpush2.bf16.msra.mxu0 0
      %301 = vmatprep.subr.bf16.mxu0 0
      %302 = vmatpush2.bf16.msra.mxu0 0
      %303 = vmatprep.subr.bf16.mxu0 0
      %304 = vmatpush2.bf16.msra.mxu0 0
      %305 = vmatprep.subr.bf16.mxu0 0
      %306 = vmatpush2.bf16.msra.mxu0 0
      %307 = vmatprep.subr.bf16.mxu0 0
      %308 = vmatpush2.bf16.msra.mxu0 0
      %309 = vmatprep.subr.bf16.mxu0 0
      %310 = vmatpush2.bf16.msra.mxu0 0
      %311 = vmatprep.subr.bf16.mxu0 0
      %312 = vmatpush2.bf16.msra.mxu0 0
      %313 = vmatprep.mubr.bf16.mxu0 0
      %314 = vmatmul.mubr.bf16.gmra.mxu0 %v273
      %v315 = vpop.f32.mrf.mxu0
      %v316 = vadd.f32 0.0, %v315
      %v317 = vpop.f32.mrf.mxu0
      %v318 = vadd.f32 0.0, %v317
      %v319 = vpop.f32.mrf.mxu0
      %v320 = vadd.f32 0.0, %v319
      %v321 = vpop.f32.mrf.mxu0
      %v322 = vadd.f32 0.0, %v321
      %323 = vmatprep.mubr.bf16.mxu0 0
      %324 = vmatmul.mubr.bf16.gmra.mxu0 %v276
      %v325 = vpop.f32.mrf.mxu0
      %v326 = vadd.f32 0.0, %v325
      %v327 = vpop.f32.mrf.mxu0
      %v328 = vadd.f32 0.0, %v327
      %v329 = vpop.f32.mrf.mxu0
      %v330 = vadd.f32 0.0, %v329
      %v331 = vpop.f32.mrf.mxu0
      %v332 = vadd.f32 0.0, %v331
      %333 = vmatprep.mubr.bf16.mxu0 0
      %334 = vmatmul.mubr.bf16.gmra.mxu0 %v279
      %v335 = vpop.f32.mrf.mxu0
      %v336 = vadd.f32 0.0, %v335
      %v337 = vpop.f32.mrf.mxu0
      %v338 = vadd.f32 0.0, %v337
      %v339 = vpop.f32.mrf.mxu0
      %v340 = vpop.f32.mrf.mxu0
      %341 = vdwg.mxu0
      %342 = vmatprep.subr.bf16.mxu0 0
      %343 = vmatpush1.bf16.msra.mxu0 0
      %344 = vmatprep.subr.bf16.mxu0 0
      %345 = vmatpush1.bf16.msra.mxu0 0
      %346 = vmatprep.subr.bf16.mxu0 0
      %347 = vmatpush1.bf16.msra.mxu0 0
      %348 = vmatprep.subr.bf16.mxu0 0
      %349 = vmatpush1.bf16.msra.mxu0 0
      %350 = vmatprep.subr.bf16.mxu0 0
      %351 = vmatpush1.bf16.msra.mxu0 0
      %352 = vmatprep.subr.bf16.mxu0 0
      %353 = vmatpush1.bf16.msra.mxu0 0
      %354 = vmatprep.subr.bf16.mxu0 %v262
      %355 = vmatpush1.bf16.msra.mxu0 %v261
      %356 = vmatprep.subr.bf16.mxu0 %v258
      %357 = vmatpush1.bf16.msra.mxu0 %v257
      %358 = vmatprep.subr.bf16.mxu0 0
      %359 = vmatpush2.bf16.msra.mxu0 0
      %360 = vmatprep.subr.bf16.mxu0 0
      %361 = vmatpush2.bf16.msra.mxu0 0
      %362 = vmatprep.subr.bf16.mxu0 0
      %363 = vmatpush2.bf16.msra.mxu0 0
      %364 = vmatprep.subr.bf16.mxu0 0
      %365 = vmatpush2.bf16.msra.mxu0 0
      %366 = vmatprep.subr.bf16.mxu0 0
      %367 = vmatpush2.bf16.msra.mxu0 0
      %368 = vmatprep.subr.bf16.mxu0 0
      %369 = vmatpush2.bf16.msra.mxu0 0
      %370 = vmatprep.subr.bf16.mxu0 0
      %371 = vmatpush2.bf16.msra.mxu0 0
      %372 = vmatprep.subr.bf16.mxu0 0
      %373 = vmatpush2.bf16.msra.mxu0 0
      %374 = vmatprep.mubr.bf16.mxu0 0
      %375 = vmatmul.mubr.bf16.gmra.mxu0 %v273
      %v376 = vpop.f32.mrf.mxu0
      %v377 = vadd.f32 0.0, %v376
      %v378 = vpop.f32.mrf.mxu0
      %v379 = vadd.f32 0.0, %v378
      %v380 = vpop.f32.mrf.mxu0
      %v381 = vadd.f32 0.0, %v380
      %v382 = vpop.f32.mrf.mxu0
      %v383 = vadd.f32 0.0, %v382
      %384 = vmatprep.mubr.bf16.mxu0 0
      %385 = vmatmul.mubr.bf16.gmra.mxu0 %v276
      %v386 = vpop.f32.mrf.mxu0
      %v387 = vadd.f32 0.0, %v386
      %v388 = vpop.f32.mrf.mxu0
      %v389 = vadd.f32 0.0, %v388
      %v390 = vpop.f32.mrf.mxu0
      %v391 = vadd.f32 0.0, %v390
      %v392 = vpop.f32.mrf.mxu0
      %v393 = vadd.f32 0.0, %v392
      %394 = vmatprep.mubr.bf16.mxu0 0
      %395 = vmatmul.mubr.bf16.gmra.mxu0 %v279
      %v396 = vpop.f32.mrf.mxu0
      %v397 = vadd.f32 0.0, %v396
      %v398 = vpop.f32.mrf.mxu0
      %v399 = vadd.f32 0.0, %v398
      %v400 = vpop.f32.mrf.mxu0
      %v401 = vpop.f32.mrf.mxu0
      %402 = vdwg.mxu0
      %v407 = vrot.slane %v316, 1
      %v408 = vrot.slane %v318, 1
      %v409 = vrot.slane %v377, 1
      %v410 = vrot.slane %v379, 1
      %411 = vrot.lane.b32.xlu0 %v407, 127
      %v412 = vpop.permute.xlu0 %411
      %413 = vrot.lane.b32.xlu0 %v408, 127
      %v414 = vpop.permute.xlu0 %413
      %415 = vrot.lane.b32.xlu0 %v409, 127
      %v416 = vpop.permute.xlu0 %415
      %417 = vrot.lane.b32.xlu0 %v410, 127
      %v418 = vpop.permute.xlu0 %417
      %vm419 = vcmask 1039360
      %v420 = vsel %vm419, %v412, %v414
      %v421 = vsel %vm419, %v414, %v416
      %v422 = vsel %vm419, %v416, %v418
      %v426 = vadd.f32 %v316, %v420
      %v427 = vadd.f32 %v318, %v421
      %v428 = vadd.f32 %v377, %v422
      %v429 = vrot.slane %v316, 2
      %v430 = vrot.slane %v318, 2
      %v431 = vrot.slane %v377, 2
      %v432 = vrot.slane %v379, 2
      %433 = vrot.lane.b32.xlu0 %v429, 126
      %v434 = vpop.permute.xlu0 %433
      %435 = vrot.lane.b32.xlu0 %v430, 126
      %v436 = vpop.permute.xlu0 %435
      %437 = vrot.lane.b32.xlu0 %v431, 126
      %v438 = vpop.permute.xlu0 %437
      %439 = vrot.lane.b32.xlu0 %v432, 126
      %v440 = vpop.permute.xlu0 %439
      %vm441 = vcmask 1031168
      %v442 = vsel %vm441, %v434, %v436
      %v443 = vsel %vm441, %v436, %v438
      %v444 = vsel %vm441, %v438, %v440
      %v448 = vadd.f32 %v426, %v442
      %v449 = vadd.f32 %v427, %v443
      %v450 = vadd.f32 %v428, %v444
      %v451 = vrot.slane %v316, 3
      %v452 = vrot.slane %v318, 3
      %v453 = vrot.slane %v377, 3
      %v454 = vrot.slane %v379, 3
      %455 = vrot.lane.b32.xlu0 %v451, 125
      %v456 = vpop.permute.xlu0 %455
      %457 = vrot.lane.b32.xlu0 %v452, 125
      %v458 = vpop.permute.xlu0 %457
      %459 = vrot.lane.b32.xlu0 %v453, 125
      %v460 = vpop.permute.xlu0 %459
      %461 = vrot.lane.b32.xlu0 %v454, 125
      %v462 = vpop.permute.xlu0 %461
      %vm463 = vcmask 1022976
      %v464 = vsel %vm463, %v456, %v458
      %v465 = vsel %vm463, %v458, %v460
      %v466 = vsel %vm463, %v460, %v462
      %v470 = vadd.f32 %v448, %v464
      %v471 = vadd.f32 %v449, %v465
      %v472 = vadd.f32 %v450, %v466
      %v473 = vrot.slane %v316, 4
      %v474 = vrot.slane %v318, 4
      %v475 = vrot.slane %v377, 4
      %v476 = vrot.slane %v379, 4
      %477 = vrot.lane.b32.xlu0 %v473, 124
      %v478 = vpop.permute.xlu0 %477
      %479 = vrot.lane.b32.xlu0 %v474, 124
      %v480 = vpop.permute.xlu0 %479
      %481 = vrot.lane.b32.xlu0 %v475, 124
      %v482 = vpop.permute.xlu0 %481
      %483 = vrot.lane.b32.xlu0 %v476, 124
      %v484 = vpop.permute.xlu0 %483
      %vm485 = vcmask 1014784
      %v486 = vsel %vm485, %v478, %v480
      %v487 = vsel %vm485, %v480, %v482
      %v488 = vsel %vm485, %v482, %v484
      %v492 = vadd.f32 %v470, %v486
      %v493 = vadd.f32 %v471, %v487
      %v494 = vadd.f32 %v472, %v488
      %v495 = vrot.slane %v316, 5
      %v496 = vrot.slane %v318, 5
      %v497 = vrot.slane %v377, 5
      %v498 = vrot.slane %v379, 5
      %499 = vrot.lane.b32.xlu0 %v495, 123
      %v500 = vpop.permute.xlu0 %499
      %501 = vrot.lane.b32.xlu0 %v496, 123
      %v502 = vpop.permute.xlu0 %501
      %503 = vrot.lane.b32.xlu0 %v497, 123
      %v504 = vpop.permute.xlu0 %503
      %505 = vrot.lane.b32.xlu0 %v498, 123
      %v506 = vpop.permute.xlu0 %505
      %vm507 = vcmask 1006592
      %v508 = vsel %vm507, %v500, %v502
      %v509 = vsel %vm507, %v502, %v504
      %v510 = vsel %vm507, %v504, %v506
      %v514 = vadd.f32 %v492, %v508
      %v515 = vadd.f32 %v493, %v509
      %v516 = vadd.f32 %v494, %v510
      %v517 = vrot.slane %v316, 6
      %v518 = vrot.slane %v318, 6
      %v519 = vrot.slane %v377, 6
      %v520 = vrot.slane %v379, 6
      %521 = vrot.lane.b32.xlu0 %v517, 106
      %v522 = vpop.permute.xlu0 %521
      %523 = vrot.lane.b32.xlu0 %v518, 106
      %v524 = vpop.permute.xlu0 %523
      %525 = vrot.lane.b32.xlu0 %v519, 106
      %v526 = vpop.permute.xlu0 %525
      %527 = vrot.lane.b32.xlu0 %v520, 106
      %v528 = vpop.permute.xlu0 %527
      %vm529 = vcmask 867328
      %v530 = vsel %vm529, %v522, %v524
      %v531 = vsel %vm529, %v524, %v526
      %v532 = vsel %vm529, %v526, %v528
      %v536 = vadd.f32 %v514, %v530
      %v537 = vadd.f32 %v515, %v531
      %v538 = vadd.f32 %v516, %v532
      %v539 = vrot.slane %v316, 7
      %v540 = vrot.slane %v318, 7
      %v541 = vrot.slane %v377, 7
      %v542 = vrot.slane %v379, 7
      %543 = vrot.lane.b32.xlu0 %v539, 105
      %v544 = vpop.permute.xlu0 %543
      %545 = vrot.lane.b32.xlu0 %v540, 105
      %v546 = vpop.permute.xlu0 %545
      %547 = vrot.lane.b32.xlu0 %v541, 105
      %v548 = vpop.permute.xlu0 %547
      %549 = vrot.lane.b32.xlu0 %v542, 105
      %v550 = vpop.permute.xlu0 %549
      %vm551 = vcmask 859136
      %v552 = vsel %vm551, %v544, %v546
      %v553 = vsel %vm551, %v546, %v548
      %v554 = vsel %vm551, %v548, %v550
      %v558 = vadd.f32 %v536, %v552
      %v559 = vadd.f32 %v537, %v553
      %v560 = vadd.f32 %v538, %v554
      %565 = vrot.lane.b32.xlu0 %v320, 104
      %v566 = vpop.permute.xlu0 %565
      %567 = vrot.lane.b32.xlu0 %v322, 104
      %v568 = vpop.permute.xlu0 %567
      %569 = vrot.lane.b32.xlu0 %v381, 104
      %v570 = vpop.permute.xlu0 %569
      %571 = vrot.lane.b32.xlu0 %v383, 104
      %v572 = vpop.permute.xlu0 %571
      %vm573 = vcmask 850944
      %v574 = vsel %vm573, %v566, %v568
      %v575 = vsel %vm573, %v568, %v570
      %v576 = vsel %vm573, %v570, %v572
      %v580 = vadd.f32 %v558, %v574
      %v581 = vadd.f32 %v559, %v575
      %v582 = vadd.f32 %v560, %v576
      %v583 = vrot.slane %v320, 1
      %v584 = vrot.slane %v322, 1
      %v585 = vrot.slane %v381, 1
      %v586 = vrot.slane %v383, 1
      %587 = vrot.lane.b32.xlu0 %v583, 103
      %v588 = vpop.permute.xlu0 %587
      %589 = vrot.lane.b32.xlu0 %v584, 103
      %v590 = vpop.permute.xlu0 %589
      %591 = vrot.lane.b32.xlu0 %v585, 103
      %v592 = vpop.permute.xlu0 %591
      %593 = vrot.lane.b32.xlu0 %v586, 103
      %v594 = vpop.permute.xlu0 %593
      %vm595 = vcmask 842752
      %v596 = vsel %vm595, %v588, %v590
      %v597 = vsel %vm595, %v590, %v592
      %v598 = vsel %vm595, %v592, %v594
      %v602 = vadd.f32 %v580, %v596
      %v603 = vadd.f32 %v581, %v597
      %v604 = vadd.f32 %v582, %v598
      %v605 = vrot.slane %v320, 2
      %v606 = vrot.slane %v322, 2
      %v607 = vrot.slane %v381, 2
      %v608 = vrot.slane %v383, 2
      %609 = vrot.lane.b32.xlu0 %v605, 102
      %v610 = vpop.permute.xlu0 %609
      %611 = vrot.lane.b32.xlu0 %v606, 102
      %v612 = vpop.permute.xlu0 %611
      %613 = vrot.lane.b32.xlu0 %v607, 102
      %v614 = vpop.permute.xlu0 %613
      %615 = vrot.lane.b32.xlu0 %v608, 102
      %v616 = vpop.permute.xlu0 %615
      %vm617 = vcmask 834560
      %v618 = vsel %vm617, %v610, %v612
      %v619 = vsel %vm617, %v612, %v614
      %v620 = vsel %vm617, %v614, %v616
      %v624 = vadd.f32 %v602, %v618
      %v625 = vadd.f32 %v603, %v619
      %v626 = vadd.f32 %v604, %v620
      %v627 = vrot.slane %v320, 3
      %v628 = vrot.slane %v322, 3
      %v629 = vrot.slane %v381, 3
      %v630 = vrot.slane %v383, 3
      %631 = vrot.lane.b32.xlu0 %v627, 101
      %v632 = vpop.permute.xlu0 %631
      %633 = vrot.lane.b32.xlu0 %v628, 101
      %v634 = vpop.permute.xlu0 %633
      %635 = vrot.lane.b32.xlu0 %v629, 101
      %v636 = vpop.permute.xlu0 %635
      %637 = vrot.lane.b32.xlu0 %v630, 101
      %v638 = vpop.permute.xlu0 %637
      %vm639 = vcmask 826368
      %v640 = vsel %vm639, %v632, %v634
      %v641 = vsel %vm639, %v634, %v636
      %v642 = vsel %vm639, %v636, %v638
      %v646 = vadd.f32 %v624, %v640
      %v647 = vadd.f32 %v625, %v641
      %v648 = vadd.f32 %v626, %v642
      %v649 = vrot.slane %v320, 4
      %v650 = vrot.slane %v322, 4
      %v651 = vrot.slane %v381, 4
      %v652 = vrot.slane %v383, 4
      %653 = vrot.lane.b32.xlu0 %v649, 84
      %v654 = vpop.permute.xlu0 %653
      %655 = vrot.lane.b32.xlu0 %v650, 84
      %v656 = vpop.permute.xlu0 %655
      %657 = vrot.lane.b32.xlu0 %v651, 84
      %v658 = vpop.permute.xlu0 %657
      %659 = vrot.lane.b32.xlu0 %v652, 84
      %v660 = vpop.permute.xlu0 %659
      %vm661 = vcmask 687104
      %v662 = vsel %vm661, %v654, %v656
      %v663 = vsel %vm661, %v656, %v658
      %v664 = vsel %vm661, %v658, %v660
      %v668 = vadd.f32 %v646, %v662
      %v669 = vadd.f32 %v647, %v663
      %v670 = vadd.f32 %v648, %v664
      %v671 = vrot.slane %v320, 5
      %v672 = vrot.slane %v322, 5
      %v673 = vrot.slane %v381, 5
      %v674 = vrot.slane %v383, 5
      %675 = vrot.lane.b32.xlu0 %v671, 83
      %v676 = vpop.permute.xlu0 %675
      %677 = vrot.lane.b32.xlu0 %v672, 83
      %v678 = vpop.permute.xlu0 %677
      %679 = vrot.lane.b32.xlu0 %v673, 83
      %v680 = vpop.permute.xlu0 %679
      %681 = vrot.lane.b32.xlu0 %v674, 83
      %v682 = vpop.permute.xlu0 %681
      %vm683 = vcmask 678912
      %v684 = vsel %vm683, %v676, %v678
      %v685 = vsel %vm683, %v678, %v680
      %v686 = vsel %vm683, %v680, %v682
      %v690 = vadd.f32 %v668, %v684
      %v691 = vadd.f32 %v669, %v685
      %v692 = vadd.f32 %v670, %v686
      %v693 = vrot.slane %v320, 6
      %v694 = vrot.slane %v322, 6
      %v695 = vrot.slane %v381, 6
      %v696 = vrot.slane %v383, 6
      %697 = vrot.lane.b32.xlu0 %v693, 82
      %v698 = vpop.permute.xlu0 %697
      %699 = vrot.lane.b32.xlu0 %v694, 82
      %v700 = vpop.permute.xlu0 %699
      %701 = vrot.lane.b32.xlu0 %v695, 82
      %v702 = vpop.permute.xlu0 %701
      %703 = vrot.lane.b32.xlu0 %v696, 82
      %v704 = vpop.permute.xlu0 %703
      %vm705 = vcmask 670720
      %v706 = vsel %vm705, %v698, %v700
      %v707 = vsel %vm705, %v700, %v702
      %v708 = vsel %vm705, %v702, %v704
      %v712 = vadd.f32 %v690, %v706
      %v713 = vadd.f32 %v691, %v707
      %v714 = vadd.f32 %v692, %v708
      %v715 = vrot.slane %v320, 7
      %v716 = vrot.slane %v322, 7
      %v717 = vrot.slane %v381, 7
      %v718 = vrot.slane %v383, 7
      %719 = vrot.lane.b32.xlu0 %v715, 81
      %v720 = vpop.permute.xlu0 %719
      %721 = vrot.lane.b32.xlu0 %v716, 81
      %v722 = vpop.permute.xlu0 %721
      %723 = vrot.lane.b32.xlu0 %v717, 81
      %v724 = vpop.permute.xlu0 %723
      %725 = vrot.lane.b32.xlu0 %v718, 81
      %v726 = vpop.permute.xlu0 %725
      %vm727 = vcmask 662528
      %v728 = vsel %vm727, %v720, %v722
      %v729 = vsel %vm727, %v722, %v724
      %v730 = vsel %vm727, %v724, %v726
      %v734 = vadd.f32 %v712, %v728
      %v735 = vadd.f32 %v713, %v729
      %v736 = vadd.f32 %v714, %v730
      %741 = vrot.lane.b32.xlu0 %v326, 80
      %v742 = vpop.permute.xlu0 %741
      %743 = vrot.lane.b32.xlu0 %v328, 80
      %v744 = vpop.permute.xlu0 %743
      %745 = vrot.lane.b32.xlu0 %v387, 80
      %v746 = vpop.permute.xlu0 %745
      %747 = vrot.lane.b32.xlu0 %v389, 80
      %v748 = vpop.permute.xlu0 %747
      %vm749 = vcmask 654336
      %v750 = vsel %vm749, %v742, %v744
      %v751 = vsel %vm749, %v744, %v746
      %v752 = vsel %vm749, %v746, %v748
      %v756 = vadd.f32 %v734, %v750
      %v757 = vadd.f32 %v735, %v751
      %v758 = vadd.f32 %v736, %v752
      %v759 = vrot.slane %v326, 1
      %v760 = vrot.slane %v328, 1
      %v761 = vrot.slane %v387, 1
      %v762 = vrot.slane %v389, 1
      %763 = vrot.lane.b32.xlu0 %v759, 79
      %v764 = vpop.permute.xlu0 %763
      %765 = vrot.lane.b32.xlu0 %v760, 79
      %v766 = vpop.permute.xlu0 %765
      %767 = vrot.lane.b32.xlu0 %v761, 79
      %v768 = vpop.permute.xlu0 %767
      %769 = vrot.lane.b32.xlu0 %v762, 79
      %v770 = vpop.permute.xlu0 %769
      %vm771 = vcmask 646144
      %v772 = vsel %vm771, %v764, %v766
      %v773 = vsel %vm771, %v766, %v768
      %v774 = vsel %vm771, %v768, %v770
      %v778 = vadd.f32 %v756, %v772
      %v779 = vadd.f32 %v757, %v773
      %v780 = vadd.f32 %v758, %v774
      %v781 = vrot.slane %v326, 2
      %v782 = vrot.slane %v328, 2
      %v783 = vrot.slane %v387, 2
      %v784 = vrot.slane %v389, 2
      %785 = vrot.lane.b32.xlu0 %v781, 62
      %v786 = vpop.permute.xlu0 %785
      %787 = vrot.lane.b32.xlu0 %v782, 62
      %v788 = vpop.permute.xlu0 %787
      %789 = vrot.lane.b32.xlu0 %v783, 62
      %v790 = vpop.permute.xlu0 %789
      %791 = vrot.lane.b32.xlu0 %v784, 62
      %v792 = vpop.permute.xlu0 %791
      %vm793 = vcmask 506880
      %v794 = vsel %vm793, %v786, %v788
      %v795 = vsel %vm793, %v788, %v790
      %v796 = vsel %vm793, %v790, %v792
      %v800 = vadd.f32 %v778, %v794
      %v801 = vadd.f32 %v779, %v795
      %v802 = vadd.f32 %v780, %v796
      %v803 = vrot.slane %v326, 3
      %v804 = vrot.slane %v328, 3
      %v805 = vrot.slane %v387, 3
      %v806 = vrot.slane %v389, 3
      %807 = vrot.lane.b32.xlu0 %v803, 61
      %v808 = vpop.permute.xlu0 %807
      %809 = vrot.lane.b32.xlu0 %v804, 61
      %v810 = vpop.permute.xlu0 %809
      %811 = vrot.lane.b32.xlu0 %v805, 61
      %v812 = vpop.permute.xlu0 %811
      %813 = vrot.lane.b32.xlu0 %v806, 61
      %v814 = vpop.permute.xlu0 %813
      %vm815 = vcmask 498688
      %v816 = vsel %vm815, %v808, %v810
      %v817 = vsel %vm815, %v810, %v812
      %v818 = vsel %vm815, %v812, %v814
      %v822 = vadd.f32 %v800, %v816
      %v823 = vadd.f32 %v801, %v817
      %v824 = vadd.f32 %v802, %v818
      %v825 = vrot.slane %v326, 4
      %v826 = vrot.slane %v328, 4
      %v827 = vrot.slane %v387, 4
      %v828 = vrot.slane %v389, 4
      %829 = vrot.lane.b32.xlu0 %v825, 60
      %v830 = vpop.permute.xlu0 %829
      %831 = vrot.lane.b32.xlu0 %v826, 60
      %v832 = vpop.permute.xlu0 %831
      %833 = vrot.lane.b32.xlu0 %v827, 60
      %v834 = vpop.permute.xlu0 %833
      %835 = vrot.lane.b32.xlu0 %v828, 60
      %v836 = vpop.permute.xlu0 %835
      %vm837 = vcmask 490496
      %v838 = vsel %vm837, %v830, %v832
      %v839 = vsel %vm837, %v832, %v834
      %v840 = vsel %vm837, %v834, %v836
      %v844 = vadd.f32 %v822, %v838
      %v845 = vadd.f32 %v823, %v839
      %v846 = vadd.f32 %v824, %v840
      %v847 = vrot.slane %v326, 5
      %v848 = vrot.slane %v328, 5
      %v849 = vrot.slane %v387, 5
      %v850 = vrot.slane %v389, 5
      %851 = vrot.lane.b32.xlu0 %v847, 59
      %v852 = vpop.permute.xlu0 %851
      %853 = vrot.lane.b32.xlu0 %v848, 59
      %v854 = vpop.permute.xlu0 %853
      %855 = vrot.lane.b32.xlu0 %v849, 59
      %v856 = vpop.permute.xlu0 %855
      %857 = vrot.lane.b32.xlu0 %v850, 59
      %v858 = vpop.permute.xlu0 %857
      %vm859 = vcmask 482304
      %v860 = vsel %vm859, %v852, %v854
      %v861 = vsel %vm859, %v854, %v856
      %v862 = vsel %vm859, %v856, %v858
      %v866 = vadd.f32 %v844, %v860
      %v867 = vadd.f32 %v845, %v861
      %v868 = vadd.f32 %v846, %v862
      %v869 = vrot.slane %v326, 6
      %v870 = vrot.slane %v328, 6
      %v871 = vrot.slane %v387, 6
      %v872 = vrot.slane %v389, 6
      %873 = vrot.lane.b32.xlu0 %v869, 58
      %v874 = vpop.permute.xlu0 %873
      %875 = vrot.lane.b32.xlu0 %v870, 58
      %v876 = vpop.permute.xlu0 %875
      %877 = vrot.lane.b32.xlu0 %v871, 58
      %v878 = vpop.permute.xlu0 %877
      %879 = vrot.lane.b32.xlu0 %v872, 58
      %v880 = vpop.permute.xlu0 %879
      %vm881 = vcmask 474112
      %v882 = vsel %vm881, %v874, %v876
      %v883 = vsel %vm881, %v876, %v878
      %v884 = vsel %vm881, %v878, %v880
      %v888 = vadd.f32 %v866, %v882
      %v889 = vadd.f32 %v867, %v883
      %v890 = vadd.f32 %v868, %v884
      %v891 = vrot.slane %v326, 7
      %v892 = vrot.slane %v328, 7
      %v893 = vrot.slane %v387, 7
      %v894 = vrot.slane %v389, 7
      %895 = vrot.lane.b32.xlu0 %v891, 57
      %v896 = vpop.permute.xlu0 %895
      %897 = vrot.lane.b32.xlu0 %v892, 57
      %v898 = vpop.permute.xlu0 %897
      %899 = vrot.lane.b32.xlu0 %v893, 57
      %v900 = vpop.permute.xlu0 %899
      %901 = vrot.lane.b32.xlu0 %v894, 57
      %v902 = vpop.permute.xlu0 %901
      %vm903 = vcmask 465920
      %v904 = vsel %vm903, %v896, %v898
      %v905 = vsel %vm903, %v898, %v900
      %v906 = vsel %vm903, %v900, %v902
      %v910 = vadd.f32 %v888, %v904
      %v911 = vadd.f32 %v889, %v905
      %v912 = vadd.f32 %v890, %v906
      %917 = vrot.lane.b32.xlu0 %v330, 40
      %v918 = vpop.permute.xlu0 %917
      %919 = vrot.lane.b32.xlu0 %v332, 40
      %v920 = vpop.permute.xlu0 %919
      %921 = vrot.lane.b32.xlu0 %v391, 40
      %v922 = vpop.permute.xlu0 %921
      %923 = vrot.lane.b32.xlu0 %v393, 40
      %v924 = vpop.permute.xlu0 %923
      %vm925 = vcmask 326656
      %v926 = vsel %vm925, %v918, %v920
      %v927 = vsel %vm925, %v920, %v922
      %v928 = vsel %vm925, %v922, %v924
      %v932 = vadd.f32 %v910, %v926
      %v933 = vadd.f32 %v911, %v927
      %v934 = vadd.f32 %v912, %v928
      %v935 = vrot.slane %v330, 1
      %v936 = vrot.slane %v332, 1
      %v937 = vrot.slane %v391, 1
      %v938 = vrot.slane %v393, 1
      %939 = vrot.lane.b32.xlu0 %v935, 39
      %v940 = vpop.permute.xlu0 %939
      %941 = vrot.lane.b32.xlu0 %v936, 39
      %v942 = vpop.permute.xlu0 %941
      %943 = vrot.lane.b32.xlu0 %v937, 39
      %v944 = vpop.permute.xlu0 %943
      %945 = vrot.lane.b32.xlu0 %v938, 39
      %v946 = vpop.permute.xlu0 %945
      %vm947 = vcmask 318464
      %v948 = vsel %vm947, %v940, %v942
      %v949 = vsel %vm947, %v942, %v944
      %v950 = vsel %vm947, %v944, %v946
      %v954 = vadd.f32 %v932, %v948
      %v955 = vadd.f32 %v933, %v949
      %v956 = vadd.f32 %v934, %v950
      %v957 = vrot.slane %v330, 2
      %v958 = vrot.slane %v332, 2
      %v959 = vrot.slane %v391, 2
      %v960 = vrot.slane %v393, 2
      %961 = vrot.lane.b32.xlu0 %v957, 38
      %v962 = vpop.permute.xlu0 %961
      %963 = vrot.lane.b32.xlu0 %v958, 38
      %v964 = vpop.permute.xlu0 %963
      %965 = vrot.lane.b32.xlu0 %v959, 38
      %v966 = vpop.permute.xlu0 %965
      %967 = vrot.lane.b32.xlu0 %v960, 38
      %v968 = vpop.permute.xlu0 %967
      %vm969 = vcmask 310272
      %v970 = vsel %vm969, %v962, %v964
      %v971 = vsel %vm969, %v964, %v966
      %v972 = vsel %vm969, %v966, %v968
      %v976 = vadd.f32 %v954, %v970
      %v977 = vadd.f32 %v955, %v971
      %v978 = vadd.f32 %v956, %v972
      %v979 = vrot.slane %v330, 3
      %v980 = vrot.slane %v332, 3
      %v981 = vrot.slane %v391, 3
      %v982 = vrot.slane %v393, 3
      %983 = vrot.lane.b32.xlu0 %v979, 37
      %v984 = vpop.permute.xlu0 %983
      %985 = vrot.lane.b32.xlu0 %v980, 37
      %v986 = vpop.permute.xlu0 %985
      %987 = vrot.lane.b32.xlu0 %v981, 37
      %v988 = vpop.permute.xlu0 %987
      %989 = vrot.lane.b32.xlu0 %v982, 37
      %v990 = vpop.permute.xlu0 %989
      %vm991 = vcmask 302080
      %v992 = vsel %vm991, %v984, %v986
      %v993 = vsel %vm991, %v986, %v988
      %v994 = vsel %vm991, %v988, %v990
      %v998 = vadd.f32 %v976, %v992
      %v999 = vadd.f32 %v977, %v993
      %v1000 = vadd.f32 %v978, %v994
      %v1001 = vrot.slane %v330, 4
      %v1002 = vrot.slane %v332, 4
      %v1003 = vrot.slane %v391, 4
      %v1004 = vrot.slane %v393, 4
      %1005 = vrot.lane.b32.xlu0 %v1001, 36
      %v1006 = vpop.permute.xlu0 %1005
      %1007 = vrot.lane.b32.xlu0 %v1002, 36
      %v1008 = vpop.permute.xlu0 %1007
      %1009 = vrot.lane.b32.xlu0 %v1003, 36
      %v1010 = vpop.permute.xlu0 %1009
      %1011 = vrot.lane.b32.xlu0 %v1004, 36
      %v1012 = vpop.permute.xlu0 %1011
      %vm1013 = vcmask 293888
      %v1014 = vsel %vm1013, %v1006, %v1008
      %v1015 = vsel %vm1013, %v1008, %v1010
      %v1016 = vsel %vm1013, %v1010, %v1012
      %v1020 = vadd.f32 %v998, %v1014
      %v1021 = vadd.f32 %v999, %v1015
      %v1022 = vadd.f32 %v1000, %v1016
      %v1023 = vrot.slane %v330, 5
      %v1024 = vrot.slane %v332, 5
      %v1025 = vrot.slane %v391, 5
      %v1026 = vrot.slane %v393, 5
      %1027 = vrot.lane.b32.xlu0 %v1023, 35
      %v1028 = vpop.permute.xlu0 %1027
      %1029 = vrot.lane.b32.xlu0 %v1024, 35
      %v1030 = vpop.permute.xlu0 %1029
      %1031 = vrot.lane.b32.xlu0 %v1025, 35
      %v1032 = vpop.permute.xlu0 %1031
      %1033 = vrot.lane.b32.xlu0 %v1026, 35
      %v1034 = vpop.permute.xlu0 %1033
      %vm1035 = vcmask 285696
      %v1036 = vsel %vm1035, %v1028, %v1030
      %v1037 = vsel %vm1035, %v1030, %v1032
      %v1038 = vsel %vm1035, %v1032, %v1034
      %v1042 = vadd.f32 %v1020, %v1036
      %v1043 = vadd.f32 %v1021, %v1037
      %v1044 = vadd.f32 %v1022, %v1038
      %v1045 = vrot.slane %v330, 6
      %v1046 = vrot.slane %v332, 6
      %v1047 = vrot.slane %v391, 6
      %v1048 = vrot.slane %v393, 6
      %1049 = vrot.lane.b32.xlu0 %v1045, 18
      %v1050 = vpop.permute.xlu0 %1049
      %1051 = vrot.lane.b32.xlu0 %v1046, 18
      %v1052 = vpop.permute.xlu0 %1051
      %1053 = vrot.lane.b32.xlu0 %v1047, 18
      %v1054 = vpop.permute.xlu0 %1053
      %1055 = vrot.lane.b32.xlu0 %v1048, 18
      %v1056 = vpop.permute.xlu0 %1055
      %vm1057 = vcmask 146432
      %v1058 = vsel %vm1057, %v1050, %v1052
      %v1059 = vsel %vm1057, %v1052, %v1054
      %v1060 = vsel %vm1057, %v1054, %v1056
      %v1064 = vadd.f32 %v1042, %v1058
      %v1065 = vadd.f32 %v1043, %v1059
      %v1066 = vadd.f32 %v1044, %v1060
      %v1067 = vrot.slane %v330, 7
      %v1068 = vrot.slane %v332, 7
      %v1069 = vrot.slane %v391, 7
      %v1070 = vrot.slane %v393, 7
      %1071 = vrot.lane.b32.xlu0 %v1067, 17
      %v1072 = vpop.permute.xlu0 %1071
      %1073 = vrot.lane.b32.xlu0 %v1068, 17
      %v1074 = vpop.permute.xlu0 %1073
      %1075 = vrot.lane.b32.xlu0 %v1069, 17
      %v1076 = vpop.permute.xlu0 %1075
      %1077 = vrot.lane.b32.xlu0 %v1070, 17
      %v1078 = vpop.permute.xlu0 %1077
      %vm1079 = vcmask 138240
      %v1080 = vsel %vm1079, %v1072, %v1074
      %v1081 = vsel %vm1079, %v1074, %v1076
      %v1082 = vsel %vm1079, %v1076, %v1078
      %v1086 = vadd.f32 %v1064, %v1080
      %v1087 = vadd.f32 %v1065, %v1081
      %v1088 = vadd.f32 %v1066, %v1082
      %1093 = vrot.lane.b32.xlu0 %v336, 16
      %v1094 = vpop.permute.xlu0 %1093
      %1095 = vrot.lane.b32.xlu0 %v338, 16
      %v1096 = vpop.permute.xlu0 %1095
      %1097 = vrot.lane.b32.xlu0 %v397, 16
      %v1098 = vpop.permute.xlu0 %1097
      %1099 = vrot.lane.b32.xlu0 %v399, 16
      %v1100 = vpop.permute.xlu0 %1099
      %vm1101 = vcmask 130048
      %v1102 = vsel %vm1101, %v1094, %v1096
      %v1103 = vsel %vm1101, %v1096, %v1098
      %v1104 = vsel %vm1101, %v1098, %v1100
      %v1108 = vadd.f32 %v1086, %v1102
      %v1109 = vadd.f32 %v1087, %v1103
      %v1110 = vadd.f32 %v1088, %v1104
      %v1111 = vrot.slane %v336, 1
      %v1112 = vrot.slane %v338, 1
      %v1113 = vrot.slane %v397, 1
      %v1114 = vrot.slane %v399, 1
      %1115 = vrot.lane.b32.xlu0 %v1111, 15
      %v1116 = vpop.permute.xlu0 %1115
      %1117 = vrot.lane.b32.xlu0 %v1112, 15
      %v1118 = vpop.permute.xlu0 %1117
      %1119 = vrot.lane.b32.xlu0 %v1113, 15
      %v1120 = vpop.permute.xlu0 %1119
      %1121 = vrot.lane.b32.xlu0 %v1114, 15
      %v1122 = vpop.permute.xlu0 %1121
      %vm1123 = vcmask 121856
      %v1124 = vsel %vm1123, %v1116, %v1118
      %v1125 = vsel %vm1123, %v1118, %v1120
      %v1126 = vsel %vm1123, %v1120, %v1122
      %v1130 = vadd.f32 %v1108, %v1124
      %v1131 = vadd.f32 %v1109, %v1125
      %v1132 = vadd.f32 %v1110, %v1126
      %v1133 = vrot.slane %v336, 2
      %v1134 = vrot.slane %v338, 2
      %v1135 = vrot.slane %v397, 2
      %v1136 = vrot.slane %v399, 2
      %1137 = vrot.lane.b32.xlu0 %v1133, 14
      %v1138 = vpop.permute.xlu0 %1137
      %1139 = vrot.lane.b32.xlu0 %v1134, 14
      %v1140 = vpop.permute.xlu0 %1139
      %1141 = vrot.lane.b32.xlu0 %v1135, 14
      %v1142 = vpop.permute.xlu0 %1141
      %1143 = vrot.lane.b32.xlu0 %v1136, 14
      %v1144 = vpop.permute.xlu0 %1143
      %vm1145 = vcmask 113664
      %v1146 = vsel %vm1145, %v1138, %v1140
      %v1147 = vsel %vm1145, %v1140, %v1142
      %v1148 = vsel %vm1145, %v1142, %v1144
      %v1152 = vadd.f32 %v1130, %v1146
      %v1153 = vadd.f32 %v1131, %v1147
      %v1154 = vadd.f32 %v1132, %v1148
      %v1155 = vrot.slane %v336, 3
      %v1156 = vrot.slane %v338, 3
      %v1157 = vrot.slane %v397, 3
      %v1158 = vrot.slane %v399, 3
      %1159 = vrot.lane.b32.xlu0 %v1155, 13
      %v1160 = vpop.permute.xlu0 %1159
      %1161 = vrot.lane.b32.xlu0 %v1156, 13
      %v1162 = vpop.permute.xlu0 %1161
      %1163 = vrot.lane.b32.xlu0 %v1157, 13
      %v1164 = vpop.permute.xlu0 %1163
      %1165 = vrot.lane.b32.xlu0 %v1158, 13
      %v1166 = vpop.permute.xlu0 %1165
      %vm1167 = vcmask 105472
      %v1168 = vsel %vm1167, %v1160, %v1162
      %v1169 = vsel %vm1167, %v1162, %v1164
      %v1170 = vsel %vm1167, %v1164, %v1166
      %v1174 = vadd.f32 %v1152, %v1168
      %v1175 = vadd.f32 %v1153, %v1169
      %v1176 = vadd.f32 %v1154, %v1170
      %v1180 = vcombine.low %v1174, %v1175
      %v1182 = vunpack.c.l.s4 1966171168
      %v1183 = vunpack.c.0.s8 %v1182
      %v1184 = vlaneseq
      %v1185 = vshrl.u32 %v1184, 7
      %v1186 = vsub.s32 %v1183, %v1185
      %v1187 = vrot.slane %v1180, %v1186
      %v1189 = vunpack.c.l.s4 1966171168
      %v1190 = vunpack.c.0.s8 %v1189
      %v1191 = vlaneseq
      %v1192 = vshrl.u32 %v1191, 7
      %v1193 = vsub.s32 %v1190, %v1192
      %v1194 = vrot.slane %v1176, %v1193
      %v1195 = vcombine.low %v1187, %v1194
      %v1197 = vunpack.c.l.s4 1966171168
      %v1198 = vunpack.c.0.s8 %v1197
      %v1199 = vlaneseq
      %v1200 = vshrl.u32 %v1199, 7
      %v1201 = vsub.s32 %v1198, %v1200
      %v1202 = vrot.slane %v1195, %v1201
      %v1204 = vlaneseq
      %vm1205 = vcmp.ge.s32.totalorder %v1204, 0
      %vm1206 = vcmp.lt.s32.totalorder %v1204, 384
      %vm1207 = vmand %vm1205, %vm1206
      %1208 = vst.msk [vmem:[%s203] sm:$0x7] %vm1207, %v1202
      %p1209 = scmp.lt.s32.totalorder %s17, 1
      %s1210 = scalar_select %p1209, %s17, 1
      %s1211 = smul.addr %s1210, 3
      %s1212 = scalar_lea.vmem %s2, %s1211
      // Predicated region
      $region29: #{xcorr.1} parent=27 // pred_check
        %p1213 = pneg %p99
      $region30: #{xcorr.1} parent=27 // pred_check_branch
        %1215 = sbr.rel (%p1213) target = $region32
      $region31: #{xcorr.1} parent=27 // pred_region
        _
      $region32: #{xcorr.1} parent=27 // pred_fallthru
        _
    $region28: #{xcorr.1} parent=5 // pred_fallthru
      _
    %p1216 = scmp.le.s32.totalorder 2, %s8
    // Predicated region
    $region33: #{xcorr.1} parent=5 // pred_check
      %p1217 = pneg %p1216
    $region34: #{xcorr.1} parent=5 // pred_check_branch
      %1219 = sbr.rel (%p1217) target = $region36
    $region35: #{xcorr.1} parent=5 // pred_region
      %s1220 = ssub.s32 %s8, 2
      // Predicated region
      $region37: #{xcorr.1} parent=35 // pred_check
        %p1221 = pneg %p105
      $region38: #{xcorr.1} parent=35 // pred_check_branch
        %1223 = sbr.rel (%p1221) target = $region40
      $region39: #{xcorr.1} parent=35 // pred_region
        %p1224 = scmp.lt.s32.totalorder %s19, 1
        %s1225 = scalar_select %p1224, %s19, 1
        %s1226 = smul.addr %s1225, 3
        %s1227 = scalar_lea.vmem %s2, %s1226
      $region40: #{xcorr.1} parent=35 // pred_fallthru
        _
    $region36: #{xcorr.1} parent=5 // pred_fallthru
      _
  $region6: #{xcorr.1} parent=0 // loop_footer
    %s12 = sadd.s32 1, %s8
  $region7: #{xcorr.1} parent=0 // loop_footer_branch
    %7 = sbr.rel target = $region3
  $region8: #{xcorr.1} parent=0 // loop_exit
    _

</llo_original>
